<compile_context>
chip_gen: v7x
topology: tpu7x:2x2x1
jax: 0.10.0
libtpu: 0.0.40
codegen_flags: <defaults>
</compile_context>

<pallas_src>
import functools

import jax
import jax.numpy as jnp
from jax.experimental import pallas as pl
from jax.experimental.pallas import tpu as pltpu


# ----------------------------------------------------------------------------
# Pallas kernel: fused CosSin + FCtanh + FCtanh + Linear, batch on the lane axis
# ----------------------------------------------------------------------------
def _mnn_kernel(qd, zmT_ref, wc_ref, ws_ref, wl_ref, b0_ref,
                w1_ref, b1_ref, w2_ref, b2_ref, out_ref):
    zmT = zmT_ref[...]                    # (3*q_ndim, tm)   batch on lanes
    qT = zmT[:qd, :]                      # (2*q_ndim, tm)   static sublane slice

    # Layer 0: CosSin feature map fused with the first Linear.
    #   feats @ W0  ==  W0c @ cos(q^T) + W0s @ sin(q^T) + W0l @ zm^T   (transposed)
    acc = jnp.dot(wl_ref[...], zmT, preferred_element_type=jnp.float32)
    acc += jnp.dot(wc_ref[...], jnp.cos(qT), preferred_element_type=jnp.float32)
    acc += jnp.dot(ws_ref[...], jnp.sin(qT), preferred_element_type=jnp.float32)
    h = jnp.tanh(acc + b0_ref[...])                                   # (H, tm)

    # Layer 1: FCtanh
    h = jnp.tanh(jnp.dot(w1_ref[...], h, preferred_element_type=jnp.float32)
                 + b1_ref[...])                                       # (H, tm)

    # Layer 2: Linear head
    y = jnp.dot(w2_ref[...], h, preferred_element_type=jnp.float32) + b2_ref[...]
    out_ref[...] = y.astype(out_ref.dtype)                            # (2*q_ndim, tm)


def _round_up(x, m):
    return ((x + m - 1) // m) * m


def _choose_tile(n, tm):
    """Pick a lane-axis batch tile. Keeps >=2 grid steps when possible (v7x megacore)."""
    tm = max(128, _round_up(tm, 128))
    if n < 256:
        # Single block equal to the full array dims (exempt from the 128 rule).
        return n, 1
    tm_eff = min(tm, _round_up(pl.cdiv(n, 2), 128))
    return tm_eff, pl.cdiv(n, tm_eff)


def mnn_mlp_pallas(zmT, kparams, q_ndim, *, tm=512):
    """zmT: (3*q_ndim, N) float32, batch on the last (lane) axis.

    kparams: (wc, ws, wl, b0, w1t, b1, w2t, b2) — see prepare_kernel_params.
    Returns dz^T with shape (2*q_ndim, N).
    """
    wc, ws, wl, b0, w1t, b1, w2t, b2 = kparams
    c_in = zmT.shape[0]
    n = zmT.shape[1]
    c_out = w2t.shape[0]
    qd = 2 * q_ndim

    tm_eff, grid = _choose_tile(n, tm)

    def resident(arr):
        # Constant index_map -> DMA'd once, stays resident across grid steps.
        return pl.BlockSpec(arr.shape, lambda i: (0, 0))

    kernel = functools.partial(_mnn_kernel, qd)

    outT = pl.pallas_call(
        kernel,
        out_shape=jax.ShapeDtypeStruct((c_out, n), zmT.dtype),
        grid_spec=pltpu.PrefetchScalarGridSpec(
            num_scalar_prefetch=0,
            grid=(grid,),
            in_specs=[
                pl.BlockSpec((c_in, tm_eff), lambda i: (0, i)),   # batch-tiled zm^T
                resident(wc), resident(ws), resident(wl), resident(b0),
                resident(w1t), resident(b1),
                resident(w2t), resident(b2),
            ],
            out_specs=pl.BlockSpec((c_out, tm_eff), lambda i: (0, i)),
        ),
        compiler_params=pltpu.CompilerParams(dimension_semantics=("parallel",)),
    )(zmT, wc, ws, wl, b0, w1t, b1, w2t, b2)
    return outT


# ----------------------------------------------------------------------------
# Parameter preparation: fold the CosSin column layout into the first weight
# ----------------------------------------------------------------------------
def prepare_kernel_params(params, q_ndim, angular_dims):
    """params: [(W0,b0),(W1,b1),(W2,b2)] with W: (in, out), b: (1, out).

    Returns weights pre-arranged for the transposed (batch-on-lanes) kernel:
      wc, ws: (H, 2q)  -- angular columns carry the cos/sin feature weights
      wl:     (H, 3q)  -- non-angular q and momentum columns carry the linear weights
      b*:     (out, 1) column biases;  w1t/w2t: (out, in) transposed weights.
    """
    (w0, b0), (w1, b1), (w2, b2) = params
    qd = 2 * q_ndim
    ang = list(angular_dims)
    na = [i for i in range(qd) if i not in set(ang)]
    A, NA = len(ang), len(na)
    H = w0.shape[1]

    wc = jnp.zeros((H, qd), w0.dtype)
    ws = jnp.zeros((H, qd), w0.dtype)
    wl = jnp.zeros((H, 3 * q_ndim), w0.dtype)
    if A:
        wc = wc.at[:, jnp.array(ang)].set(w0[0:A, :].T)
        ws = ws.at[:, jnp.array(ang)].set(w0[A:2 * A, :].T)
    if NA:
        wl = wl.at[:, jnp.array(na)].set(w0[2 * A:2 * A + NA, :].T)
    wl = wl.at[:, qd:].set(w0[2 * A + NA:, :].T)

    return (wc, ws, wl, b0.T, w1.T, b1.T, w2.T, b2.T)


# ----------------------------------------------------------------------------
# Deterministic parameter init (orthogonal weights, uniform biases — nn.Linear style)
# ----------------------------------------------------------------------------
def init_params(key, chs, c_out):
    dims = list(chs) + [c_out]
    params = []
    ortho = jax.nn.initializers.orthogonal()
    for i in range(len(dims) - 1):
        fan_in, fan_out = dims[i], dims[i + 1]
        key, kw, kb = jax.random.split(key, 3)
        # torch orthogonal_ init is on the (out, in) weight; store transposed (in, out).
        w = ortho(kw, (fan_out, fan_in), jnp.float32).T
        bound = 1.0 / jnp.sqrt(fan_in)
        b = jax.random.uniform(kb, (1, fan_out), jnp.float32, -bound, bound)
        params.append((w, b))
    return params


# ----------------------------------------------------------------------------
# mNN.forward(t, (z, m)) -> (dz, dm)
# ----------------------------------------------------------------------------
def mnn_forward(t, z, m, kparams, q_ndim, *, tm=512):
    assert t.ndim == 0 and z.ndim == 2
    assert z.shape[-1] == 2 * q_ndim
    # Transposed concat: batch goes to the lane axis for the kernel (tiny 3q x N array).
    zmT = jnp.concatenate([z, m], axis=1).T          # (3*q_ndim, N)
    dzT = mnn_mlp_pallas(zmT, kparams, q_ndim, tm=tm)
    dz = dzT.T                                       # (N, 2*q_ndim)
    dm = jnp.zeros_like(m)
    return dz, dm
    # TODO(synk): `integrate` (torchdiffeq odeint / rk4 driver) and the `nfe` counter
    # are solver-side glue, not part of the forward hot path; not translated.


# ----------------------------------------------------------------------------
# Pure-JAX reference (mirrors the PyTorch module exactly) for validation
# ----------------------------------------------------------------------------
def mnn_forward_ref(t, z, m, params, q_ndim, angular_dims):
    hi = jax.lax.Precision.HIGHEST
    zm = jnp.concatenate([z, m], axis=1)
    qd = 2 * q_ndim
    q, other = zm[:, :qd], zm[:, qd:]
    ang = list(angular_dims)
    na = [i for i in range(qd) if i not in set(ang)]
    parts = []
    if ang:
        qa = q[:, jnp.array(ang)]
        parts += [jnp.cos(qa), jnp.sin(qa)]
    if na:
        parts += [q[:, jnp.array(na)]]
    feats = jnp.concatenate(parts + [other], axis=-1)
    (w0, b0), (w1, b1), (w2, b2) = params
    h = jnp.tanh(jnp.dot(feats, w0, precision=hi) + b0)
    h = jnp.tanh(jnp.dot(h, w1, precision=hi) + b1)
    dz = jnp.dot(h, w2, precision=hi) + b2
    return dz, jnp.zeros_like(m)


if __name__ == "__main__":
    # Small shapes consistent with the module (scaled-down hidden size):
    # dof_ndim (q_ndim) = 1, hidden_size = 32, num_layers = 2, angular_dims = (0,)
    q_ndim = 1
    hidden = 32
    num_layers = 2
    angular_dims = (0,)
    N = 512  # with tm=512 the tile chooser keeps 2 grid steps (v7x megacore friendly)

    chs = [3 * q_ndim + len(angular_dims)] + num_layers * [hidden]  # [4, 32, 32]
    c_out = 2 * q_ndim

    key = jax.random.PRNGKey(0)
    kz, km, kp = jax.random.split(key, 3)
    z = jax.random.normal(kz, (N, 2 * q_ndim), jnp.float32)
    m = jax.random.normal(km, (N, q_ndim), jnp.float32)
    t = jnp.float32(0.0)

    params = init_params(kp, chs, c_out)
    kparams = prepare_kernel_params(params, q_ndim, angular_dims)

    dz, dm = mnn_forward(t, z, m, kparams, q_ndim, tm=512)
    jax.block_until_ready((dz, dm))

    dz_ref, dm_ref = mnn_forward_ref(t, z, m, params, q_ndim, angular_dims)
    jax.block_until_ready((dz_ref, dm_ref))

    assert dz.shape == (N, 2 * q_ndim) and dm.shape == (N, q_ndim)
    assert bool(jnp.all(dm == 0.0))
    assert bool(jnp.allclose(dz, dz_ref, atol=1e-3, rtol=1e-3)), "kernel mismatch vs reference"
    print("KERNEL_OK")
</pallas_src>

<mosaic_0001>
module attributes {stable_mosaic.version = 11 : i64} {
  func.func @_mnn_kernel(%arg0: i32, %arg1: memref<3x256xf32, #tpu.memory_space<vmem>>, %arg2: memref<32x2xf32, #tpu.memory_space<vmem>>, %arg3: memref<32x2xf32, #tpu.memory_space<vmem>>, %arg4: memref<32x3xf32, #tpu.memory_space<vmem>>, %arg5: memref<32x1xf32, #tpu.memory_space<vmem>>, %arg6: memref<32x32xf32, #tpu.memory_space<vmem>>, %arg7: memref<32x1xf32, #tpu.memory_space<vmem>>, %arg8: memref<2x32xf32, #tpu.memory_space<vmem>>, %arg9: memref<2x1xf32, #tpu.memory_space<vmem>>, %arg10: memref<2x256xf32, #tpu.memory_space<vmem>>) attributes {dimension_semantics = [#tpu.dimension_semantics<parallel>], iteration_bounds = array<i64: 2>, scalar_prefetch = 0 : i64, scratch_operands = 0 : i64, tpu.core_type = #tpu.core_type<tc>, window_params = [{transform_indices = @transform_0, window_bounds = array<i64: 3, 256>}, {pipeline_mode = #tpu.pipeline_mode<synchronous>, transform_indices = @transform_1, window_bounds = array<i64: 32, 2>}, {pipeline_mode = #tpu.pipeline_mode<synchronous>, transform_indices = @transform_2, window_bounds = array<i64: 32, 2>}, {pipeline_mode = #tpu.pipeline_mode<synchronous>, transform_indices = @transform_3, window_bounds = array<i64: 32, 3>}, {pipeline_mode = #tpu.pipeline_mode<synchronous>, transform_indices = @transform_4, window_bounds = array<i64: 32, 1>}, {pipeline_mode = #tpu.pipeline_mode<synchronous>, transform_indices = @transform_5, window_bounds = array<i64: 32, 32>}, {pipeline_mode = #tpu.pipeline_mode<synchronous>, transform_indices = @transform_6, window_bounds = array<i64: 32, 1>}, {pipeline_mode = #tpu.pipeline_mode<synchronous>, transform_indices = @transform_7, window_bounds = array<i64: 2, 32>}, {pipeline_mode = #tpu.pipeline_mode<synchronous>, transform_indices = @transform_8, window_bounds = array<i64: 2, 1>}, {transform_indices = @transform_9, window_bounds = array<i64: 2, 256>}]} {
    %c0 = arith.constant 0 : index
    %c0_0 = arith.constant 0 : index
    %0 = vector.load %arg1[%c0, %c0_0] : memref<3x256xf32, #tpu.memory_space<vmem>>, vector<3x256xf32>
    %1 = vector.extract_strided_slice %0 {offsets = [0, 0], sizes = [2, 256], strides = [1, 1]} : vector<3x256xf32> to vector<2x256xf32>
    %c0_1 = arith.constant 0 : index
    %c0_2 = arith.constant 0 : index
    %2 = vector.load %arg4[%c0_1, %c0_2] : memref<32x3xf32, #tpu.memory_space<vmem>>, vector<32x3xf32>
    %cst = arith.constant dense<0.000000e+00> : vector<32x256xf32>
    %3 = tpu.matmul %2, %0, %cst {dimension_numbers = #tpu.dot_dimension_numbers<[1], [0], [0], [1], [0, 0, 1, 1], [], []>} : vector<32x3xf32>, vector<3x256xf32>, vector<32x256xf32> -> vector<32x256xf32>
    %c0_3 = arith.constant 0 : index
    %c0_4 = arith.constant 0 : index
    %4 = vector.load %arg2[%c0_3, %c0_4] : memref<32x2xf32, #tpu.memory_space<vmem>>, vector<32x2xf32>
    %5 = math.cos %1 : vector<2x256xf32>
    %cst_5 = arith.constant dense<0.000000e+00> : vector<32x256xf32>
    %6 = tpu.matmul %4, %5, %cst_5 {dimension_numbers = #tpu.dot_dimension_numbers<[1], [0], [0], [1], [0, 0, 1, 1], [], []>} : vector<32x2xf32>, vector<2x256xf32>, vector<32x256xf32> -> vector<32x256xf32>
    %7 = arith.addf %3, %6 : vector<32x256xf32>
    %c0_6 = arith.constant 0 : index
    %c0_7 = arith.constant 0 : index
    %8 = vector.load %arg3[%c0_6, %c0_7] : memref<32x2xf32, #tpu.memory_space<vmem>>, vector<32x2xf32>
    %9 = math.sin %1 : vector<2x256xf32>
    %cst_8 = arith.constant dense<0.000000e+00> : vector<32x256xf32>
    %10 = tpu.matmul %8, %9, %cst_8 {dimension_numbers = #tpu.dot_dimension_numbers<[1], [0], [0], [1], [0, 0, 1, 1], [], []>} : vector<32x2xf32>, vector<2x256xf32>, vector<32x256xf32> -> vector<32x256xf32>
    %11 = arith.addf %7, %10 : vector<32x256xf32>
    %c0_9 = arith.constant 0 : index
    %c0_10 = arith.constant 0 : index
    %12 = vector.load %arg5[%c0_9, %c0_10] : memref<32x1xf32, #tpu.memory_space<vmem>>, vector<32x1xf32>
    %13 = vector.broadcast %12 : vector<32x1xf32> to vector<32x256xf32>
    %14 = arith.addf %11, %13 : vector<32x256xf32>
    %15 = math.tanh %14 : vector<32x256xf32>
    %c0_11 = arith.constant 0 : index
    %c0_12 = arith.constant 0 : index
    %16 = vector.load %arg6[%c0_11, %c0_12] : memref<32x32xf32, #tpu.memory_space<vmem>>, vector<32x32xf32>
    %cst_13 = arith.constant dense<0.000000e+00> : vector<32x256xf32>
    %17 = tpu.matmul %16, %15, %cst_13 {dimension_numbers = #tpu.dot_dimension_numbers<[1], [0], [0], [1], [0, 0, 1, 1], [], []>} : vector<32x32xf32>, vector<32x256xf32>, vector<32x256xf32> -> vector<32x256xf32>
    %c0_14 = arith.constant 0 : index
    %c0_15 = arith.constant 0 : index
    %18 = vector.load %arg7[%c0_14, %c0_15] : memref<32x1xf32, #tpu.memory_space<vmem>>, vector<32x1xf32>
    %19 = vector.broadcast %18 : vector<32x1xf32> to vector<32x256xf32>
    %20 = arith.addf %17, %19 : vector<32x256xf32>
    %21 = math.tanh %20 : vector<32x256xf32>
    %c0_16 = arith.constant 0 : index
    %c0_17 = arith.constant 0 : index
    %22 = vector.load %arg8[%c0_16, %c0_17] : memref<2x32xf32, #tpu.memory_space<vmem>>, vector<2x32xf32>
    %cst_18 = arith.constant dense<0.000000e+00> : vector<2x256xf32>
    %23 = tpu.matmul %22, %21, %cst_18 {dimension_numbers = #tpu.dot_dimension_numbers<[1], [0], [0], [1], [0, 0, 1, 1], [], []>} : vector<2x32xf32>, vector<32x256xf32>, vector<2x256xf32> -> vector<2x256xf32>
    %c0_19 = arith.constant 0 : index
    %c0_20 = arith.constant 0 : index
    %24 = vector.load %arg9[%c0_19, %c0_20] : memref<2x1xf32, #tpu.memory_space<vmem>>, vector<2x1xf32>
    %25 = vector.broadcast %24 : vector<2x1xf32> to vector<2x256xf32>
    %26 = arith.addf %23, %25 : vector<2x256xf32>
    %c0_21 = arith.constant 0 : index
    %c0_22 = arith.constant 0 : index
    %27 = vector.load %arg10[%c0_21, %c0_22] : memref<2x256xf32, #tpu.memory_space<vmem>>, vector<2x256xf32>
    tpu.vector_store %arg10[%c0_21, %c0_22], %26 {strides = array<i32>} : memref<2x256xf32, #tpu.memory_space<vmem>>, vector<2x256xf32>,
    return
  }
  func.func @transform_0(%arg0: i32) -> (i32, i32) {
    %c0_i32 = arith.constant 0 : i32
    %c0_i32_0 = arith.constant 0 : i32
    return %c0_i32, %arg0 : i32, i32
  }
  func.func @transform_1(%arg0: i32) -> (i32, i32) {
    %c0_i32 = arith.constant 0 : i32
    %c0_i32_0 = arith.constant 0 : i32
    %c0_i32_1 = arith.constant 0 : i32
    return %c0_i32, %c0_i32_0 : i32, i32
  }
  func.func @transform_2(%arg0: i32) -> (i32, i32) {
    %c0_i32 = arith.constant 0 : i32
    %c0_i32_0 = arith.constant 0 : i32
    %c0_i32_1 = arith.constant 0 : i32
    return %c0_i32, %c0_i32_0 : i32, i32
  }
  func.func @transform_3(%arg0: i32) -> (i32, i32) {
    %c0_i32 = arith.constant 0 : i32
    %c0_i32_0 = arith.constant 0 : i32
    %c0_i32_1 = arith.constant 0 : i32
    return %c0_i32, %c0_i32_0 : i32, i32
  }
  func.func @transform_4(%arg0: i32) -> (i32, i32) {
    %c0_i32 = arith.constant 0 : i32
    %c0_i32_0 = arith.constant 0 : i32
    %c0_i32_1 = arith.constant 0 : i32
    return %c0_i32, %c0_i32_0 : i32, i32
  }
  func.func @transform_5(%arg0: i32) -> (i32, i32) {
    %c0_i32 = arith.constant 0 : i32
    %c0_i32_0 = arith.constant 0 : i32
    %c0_i32_1 = arith.constant 0 : i32
    return %c0_i32, %c0_i32_0 : i32, i32
  }
  func.func @transform_6(%arg0: i32) -> (i32, i32) {
    %c0_i32 = arith.constant 0 : i32
    %c0_i32_0 = arith.constant 0 : i32
    %c0_i32_1 = arith.constant 0 : i32
    return %c0_i32, %c0_i32_0 : i32, i32
  }
  func.func @transform_7(%arg0: i32) -> (i32, i32) {
    %c0_i32 = arith.constant 0 : i32
    %c0_i32_0 = arith.constant 0 : i32
    %c0_i32_1 = arith.constant 0 : i32
    return %c0_i32, %c0_i32_0 : i32, i32
  }
  func.func @transform_8(%arg0: i32) -> (i32, i32) {
    %c0_i32 = arith.constant 0 : i32
    %c0_i32_0 = arith.constant 0 : i32
    %c0_i32_1 = arith.constant 0 : i32
    return %c0_i32, %c0_i32_0 : i32, i32
  }
  func.func @transform_9(%arg0: i32) -> (i32, i32) {
    %c0_i32 = arith.constant 0 : i32
    %c0_i32_0 = arith.constant 0 : i32
    return %c0_i32, %arg0 : i32, i32
  }
}

</mosaic_0001>

<llo_original>
// kernel: tpu_custom_call.1
$region0: #{tpu_custom_call.1}
  #allocation0 [shape = 'u32[]', space=smem, size = 0x4, offset = 0x4, fixed_abs, tag = 'smem constant byte address 0x4 - core index']
  #allocation1 [shape = 'u32[144,128]{1,0:T(1,128)}', space=vmem, size = 0x12000, scoped, tag = 'internal scratch']
  %s0 = inlined_call_operand.vmem [shape: f32[3,512], index: 0, kind: input, shape index: {}]
  %s1 = inlined_call_operand.vmem [shape: f32[32,2], index: 1, kind: input, shape index: {}]
  %s2 = inlined_call_operand.vmem [shape: f32[32,2], index: 2, kind: input, shape index: {}]
  %s3 = inlined_call_operand.vmem [shape: f32[32,3], index: 3, kind: input, shape index: {}]
  %s4 = inlined_call_operand.vmem [shape: f32[32,1], index: 4, kind: input, shape index: {}]
  %s5 = inlined_call_operand.vmem [shape: f32[32,32], index: 5, kind: input, shape index: {}]
  %s6 = inlined_call_operand.vmem [shape: f32[32,1], index: 6, kind: input, shape index: {}]
  %s7 = inlined_call_operand.vmem [shape: f32[2,32], index: 7, kind: input, shape index: {}]
  %s8 = inlined_call_operand.vmem [shape: f32[2,1], index: 8, kind: input, shape index: {}]
  %s9 = inlined_call_operand.hbm [shape: f32[2,512], index: 9, kind: output, shape index: {}]
  %s10 = sld [smem:[#allocation0]]
  $region69: #{tpu_custom_call.1} parent=0
    _
  %s12 = ssub.s32 1, %s10
  %s13 = scalar_select 0, %s12, %s10
  $region1: #{tpu_custom_call.1} parent=0
    #allocation2 [shape = 'u8[4096]{0}', space=vmem, size = 0x1000, scoped, tag = 'output window, operand 0']
    #allocation3 [shape = 's32[2]{0}', space=sflag, size = 0x8, scoped, tag = 'scoped memory for tpu_custom_call.1']
    %14 = vsyncpa [#allocation3], 0
    %s15 = scalar_lea.sflag [#allocation3], 1
    %16 = vsyncpa %s15, 0
    loop: start=0, step=1, limit=4
    $region2: #{tpu_custom_call.1} parent=1 // loop_pre_header
      _
    $region3: #{tpu_custom_call.1} parent=1 // loop_header
      %s18 = sphi 0, %s22
      %p19 = scmp.ge.s32.totalorder %s18, 4
      %s28 = sphi 0, %s30
      %s31 = sphi 0, %s28
      %s32 = sphi 0, %s31
      %s48 = sphi 0, %s32
      %s52 = sphi 0, %s52
      %s54 = sphi 0, %s52
      %s55 = sphi 0, %s54
      %s69 = sphi 0, %s55
      %s73 = sphi 0, %s73
      %s75 = sphi 0, %s73
      %s76 = sphi 0, %s75
      %s90 = sphi 0, %s76
      %s94 = sphi 0, %s94
      %s96 = sphi 0, %s94
      %s97 = sphi 0, %s96
      %s111 = sphi 0, %s97
      %s115 = sphi 0, %s115
      %s117 = sphi 0, %s115
      %s118 = sphi 0, %s117
      %s132 = sphi 0, %s118
      %s136 = sphi 0, %s136
      %s138 = sphi 0, %s136
      %s139 = sphi 0, %s138
      %s153 = sphi 0, %s139
      %s157 = sphi 0, %s157
      %s159 = sphi 0, %s157
      %s160 = sphi 0, %s159
      %s174 = sphi 0, %s160
      %s178 = sphi 0, %s178
      %s180 = sphi 0, %s178
      %s181 = sphi 0, %s180
      %s195 = sphi 0, %s181
      %s199 = sphi 0, %s199
      %s201 = sphi 0, %s199
      %s202 = sphi 0, %s201
      %s216 = sphi 0, %s202
      %s222 = sphi 0, %s224
      %s225 = sphi 0, %s222
      %s226 = sphi 0, %s225
      %s242 = sphi 0, %s226
    $region4: #{tpu_custom_call.1} parent=1 // loop_header_branch
      %21 = sbr.rel (%p19) target = $region8
    $region5: #{tpu_custom_call.1} parent=1 // loop_body
      %s23 = ssub.s32 %s18, 1
      %s24 = ssub.s32 %s18, 2
      %s25 = sadd.s32 %s18, 1
      %s26 = ssub.s32 %s18, %s25
      %p27 = scmp.eq.s32.totalorder %s26, 0
      %s29 = sadd.s32 %s28, 1
      %s30 = scalar_select %p27, %s28, %s29
      %p33 = pneg %p27
      %p34 = scmp.eq.s32.totalorder %s18, 1
      %p35 = por %p33, %p34
      %p36 = scmp.ne.s32.totalorder %s28, %s31
      %p37 = scmp.eq.s32.totalorder %s18, 0
      %p38 = por %p36, %p37
      %p39 = scmp.ne.s32.totalorder %s28, %s31
      %p40 = scmp.eq.s32.totalorder %s23, 1
      %p41 = por %p39, %p40
      %p42 = scmp.ne.s32.totalorder %s31, %s32
      %p43 = scmp.eq.s32.totalorder %s23, 0
      %p44 = por %p42, %p43
      %p45 = scmp.ne.s32.totalorder %s31, %s32
      %p46 = scmp.eq.s32.totalorder %s24, 1
      %p47 = por %p45, %p46
      %p49 = scmp.ne.s32.totalorder %s32, %s48
      %p50 = scmp.eq.s32.totalorder %s24, 0
      %p51 = por %p49, %p50
      %s53 = sadd.s32 %s52, 1
      %p56 = scmp.eq.s32.totalorder %s18, 1
      %p57 = scmp.ne.s32.totalorder %s52, %s54
      %p58 = scmp.eq.s32.totalorder %s18, 0
      %p59 = por %p57, %p58
      %p60 = scmp.ne.s32.totalorder %s52, %s54
      %p61 = scmp.eq.s32.totalorder %s23, 1
      %p62 = por %p60, %p61
      %p63 = scmp.ne.s32.totalorder %s54, %s55
      %p64 = scmp.eq.s32.totalorder %s23, 0
      %p65 = por %p63, %p64
      %p66 = scmp.ne.s32.totalorder %s54, %s55
      %p67 = scmp.eq.s32.totalorder %s24, 1
      %p68 = por %p66, %p67
      %p70 = scmp.ne.s32.totalorder %s55, %s69
      %p71 = scmp.eq.s32.totalorder %s24, 0
      %p72 = por %p70, %p71
      %s74 = sadd.s32 %s73, 1
      %p77 = scmp.eq.s32.totalorder %s18, 1
      %p78 = scmp.ne.s32.totalorder %s73, %s75
      %p79 = scmp.eq.s32.totalorder %s18, 0
      %p80 = por %p78, %p79
      %p81 = scmp.ne.s32.totalorder %s73, %s75
      %p82 = scmp.eq.s32.totalorder %s23, 1
      %p83 = por %p81, %p82
      %p84 = scmp.ne.s32.totalorder %s75, %s76
      %p85 = scmp.eq.s32.totalorder %s23, 0
      %p86 = por %p84, %p85
      %p87 = scmp.ne.s32.totalorder %s75, %s76
      %p88 = scmp.eq.s32.totalorder %s24, 1
      %p89 = por %p87, %p88
      %p91 = scmp.ne.s32.totalorder %s76, %s90
      %p92 = scmp.eq.s32.totalorder %s24, 0
      %p93 = por %p91, %p92
      %s95 = sadd.s32 %s94, 1
      %p98 = scmp.eq.s32.totalorder %s18, 1
      %p99 = scmp.ne.s32.totalorder %s94, %s96
      %p100 = scmp.eq.s32.totalorder %s18, 0
      %p101 = por %p99, %p100
      %p102 = scmp.ne.s32.totalorder %s94, %s96
      %p103 = scmp.eq.s32.totalorder %s23, 1
      %p104 = por %p102, %p103
      %p105 = scmp.ne.s32.totalorder %s96, %s97
      %p106 = scmp.eq.s32.totalorder %s23, 0
      %p107 = por %p105, %p106
      %p108 = scmp.ne.s32.totalorder %s96, %s97
      %p109 = scmp.eq.s32.totalorder %s24, 1
      %p110 = por %p108, %p109
      %p112 = scmp.ne.s32.totalorder %s97, %s111
      %p113 = scmp.eq.s32.totalorder %s24, 0
      %p114 = por %p112, %p113
      %s116 = sadd.s32 %s115, 1
      %p119 = scmp.eq.s32.totalorder %s18, 1
      %p120 = scmp.ne.s32.totalorder %s115, %s117
      %p121 = scmp.eq.s32.totalorder %s18, 0
      %p122 = por %p120, %p121
      %p123 = scmp.ne.s32.totalorder %s115, %s117
      %p124 = scmp.eq.s32.totalorder %s23, 1
      %p125 = por %p123, %p124
      %p126 = scmp.ne.s32.totalorder %s117, %s118
      %p127 = scmp.eq.s32.totalorder %s23, 0
      %p128 = por %p126, %p127
      %p129 = scmp.ne.s32.totalorder %s117, %s118
      %p130 = scmp.eq.s32.totalorder %s24, 1
      %p131 = por %p129, %p130
      %p133 = scmp.ne.s32.totalorder %s118, %s132
      %p134 = scmp.eq.s32.totalorder %s24, 0
      %p135 = por %p133, %p134
      %s137 = sadd.s32 %s136, 1
      %p140 = scmp.eq.s32.totalorder %s18, 1
      %p141 = scmp.ne.s32.totalorder %s136, %s138
      %p142 = scmp.eq.s32.totalorder %s18, 0
      %p143 = por %p141, %p142
      %p144 = scmp.ne.s32.totalorder %s136, %s138
      %p145 = scmp.eq.s32.totalorder %s23, 1
      %p146 = por %p144, %p145
      %p147 = scmp.ne.s32.totalorder %s138, %s139
      %p148 = scmp.eq.s32.totalorder %s23, 0
      %p149 = por %p147, %p148
      %p150 = scmp.ne.s32.totalorder %s138, %s139
      %p151 = scmp.eq.s32.totalorder %s24, 1
      %p152 = por %p150, %p151
      %p154 = scmp.ne.s32.totalorder %s139, %s153
      %p155 = scmp.eq.s32.totalorder %s24, 0
      %p156 = por %p154, %p155
      %s158 = sadd.s32 %s157, 1
      %p161 = scmp.eq.s32.totalorder %s18, 1
      %p162 = scmp.ne.s32.totalorder %s157, %s159
      %p163 = scmp.eq.s32.totalorder %s18, 0
      %p164 = por %p162, %p163
      %p165 = scmp.ne.s32.totalorder %s157, %s159
      %p166 = scmp.eq.s32.totalorder %s23, 1
      %p167 = por %p165, %p166
      %p168 = scmp.ne.s32.totalorder %s159, %s160
      %p169 = scmp.eq.s32.totalorder %s23, 0
      %p170 = por %p168, %p169
      %p171 = scmp.ne.s32.totalorder %s159, %s160
      %p172 = scmp.eq.s32.totalorder %s24, 1
      %p173 = por %p171, %p172
      %p175 = scmp.ne.s32.totalorder %s160, %s174
      %p176 = scmp.eq.s32.totalorder %s24, 0
      %p177 = por %p175, %p176
      %s179 = sadd.s32 %s178, 1
      %p182 = scmp.eq.s32.totalorder %s18, 1
      %p183 = scmp.ne.s32.totalorder %s178, %s180
      %p184 = scmp.eq.s32.totalorder %s18, 0
      %p185 = por %p183, %p184
      %p186 = scmp.ne.s32.totalorder %s178, %s180
      %p187 = scmp.eq.s32.totalorder %s23, 1
      %p188 = por %p186, %p187
      %p189 = scmp.ne.s32.totalorder %s180, %s181
      %p190 = scmp.eq.s32.totalorder %s23, 0
      %p191 = por %p189, %p190
      %p192 = scmp.ne.s32.totalorder %s180, %s181
      %p193 = scmp.eq.s32.totalorder %s24, 1
      %p194 = por %p192, %p193
      %p196 = scmp.ne.s32.totalorder %s181, %s195
      %p197 = scmp.eq.s32.totalorder %s24, 0
      %p198 = por %p196, %p197
      %s200 = sadd.s32 %s199, 1
      %p203 = scmp.eq.s32.totalorder %s18, 1
      %p204 = scmp.ne.s32.totalorder %s199, %s201
      %p205 = scmp.eq.s32.totalorder %s18, 0
      %p206 = por %p204, %p205
      %p207 = scmp.ne.s32.totalorder %s199, %s201
      %p208 = scmp.eq.s32.totalorder %s23, 1
      %p209 = por %p207, %p208
      %p210 = scmp.ne.s32.totalorder %s201, %s202
      %p211 = scmp.eq.s32.totalorder %s23, 0
      %p212 = por %p210, %p211
      %p213 = scmp.ne.s32.totalorder %s201, %s202
      %p214 = scmp.eq.s32.totalorder %s24, 1
      %p215 = por %p213, %p214
      %p217 = scmp.ne.s32.totalorder %s202, %s216
      %p218 = scmp.eq.s32.totalorder %s24, 0
      %p219 = por %p217, %p218
      %s220 = ssub.s32 %s18, %s25
      %p221 = scmp.eq.s32.totalorder %s220, 0
      %s223 = sadd.s32 %s222, 1
      %s224 = scalar_select %p221, %s222, %s223
      %p227 = pneg %p221
      %p228 = scmp.eq.s32.totalorder %s18, 1
      %p229 = por %p227, %p228
      %p230 = scmp.ne.s32.totalorder %s222, %s225
      %p231 = scmp.eq.s32.totalorder %s18, 0
      %p232 = por %p230, %p231
      %p233 = scmp.ne.s32.totalorder %s222, %s225
      %p234 = scmp.eq.s32.totalorder %s23, 1
      %p235 = por %p233, %p234
      %p236 = scmp.ne.s32.totalorder %s225, %s226
      %p237 = scmp.eq.s32.totalorder %s23, 0
      %p238 = por %p236, %p237
      %p239 = scmp.ne.s32.totalorder %s225, %s226
      %p240 = scmp.eq.s32.totalorder %s24, 1
      %p241 = por %p239, %p240
      %p243 = scmp.ne.s32.totalorder %s226, %s242
      %p244 = scmp.eq.s32.totalorder %s24, 0
      %p245 = por %p243, %p244
      %p246 = scmp.le.s32.totalorder 1, %s18
      %p247 = scmp.lt.s32.totalorder %s18, 3
      %p248 = pnand %p246, %p247
      %p249 = pneg %p248
      // Predicated region
      $region9: #{tpu_custom_call.1} parent=5 // pred_check
        _
      $region10: #{tpu_custom_call.1} parent=5 // pred_check_branch
        %251 = sbr.rel (%p248) target = $region12
      $region11: #{tpu_custom_call.1} parent=5 // pred_region
        %s252 = ssub.s32 %s18, 1
        // Predicated region
        $region13: #{tpu_custom_call.1} parent=11 // pred_check
          %p253 = pneg %p65
        $region14: #{tpu_custom_call.1} parent=11 // pred_check_branch
          %255 = sbr.rel (%p253) target = $region16
        $region15: #{tpu_custom_call.1} parent=11 // pred_region
          _
        $region16: #{tpu_custom_call.1} parent=11 // pred_fallthru
          _
        // Predicated region
        $region17: #{tpu_custom_call.1} parent=11 // pred_check
          %p256 = pneg %p86
        $region18: #{tpu_custom_call.1} parent=11 // pred_check_branch
          %258 = sbr.rel (%p256) target = $region20
        $region19: #{tpu_custom_call.1} parent=11 // pred_region
          _
        $region20: #{tpu_custom_call.1} parent=11 // pred_fallthru
          _
        // Predicated region
        $region21: #{tpu_custom_call.1} parent=11 // pred_check
          %p259 = pneg %p107
        $region22: #{tpu_custom_call.1} parent=11 // pred_check_branch
          %261 = sbr.rel (%p259) target = $region24
        $region23: #{tpu_custom_call.1} parent=11 // pred_region
          _
        $region24: #{tpu_custom_call.1} parent=11 // pred_fallthru
          _
        // Predicated region
        $region25: #{tpu_custom_call.1} parent=11 // pred_check
          %p262 = pneg %p128
        $region26: #{tpu_custom_call.1} parent=11 // pred_check_branch
          %264 = sbr.rel (%p262) target = $region28
        $region27: #{tpu_custom_call.1} parent=11 // pred_region
          _
        $region28: #{tpu_custom_call.1} parent=11 // pred_fallthru
          _
        // Predicated region
        $region29: #{tpu_custom_call.1} parent=11 // pred_check
          %p265 = pneg %p149
        $region30: #{tpu_custom_call.1} parent=11 // pred_check_branch
          %267 = sbr.rel (%p265) target = $region32
        $region31: #{tpu_custom_call.1} parent=11 // pred_region
          _
        $region32: #{tpu_custom_call.1} parent=11 // pred_fallthru
          _
        // Predicated region
        $region33: #{tpu_custom_call.1} parent=11 // pred_check
          %p268 = pneg %p170
        $region34: #{tpu_custom_call.1} parent=11 // pred_check_branch
          %270 = sbr.rel (%p268) target = $region36
        $region35: #{tpu_custom_call.1} parent=11 // pred_region
          _
        $region36: #{tpu_custom_call.1} parent=11 // pred_fallthru
          _
        // Predicated region
        $region37: #{tpu_custom_call.1} parent=11 // pred_check
          %p271 = pneg %p191
        $region38: #{tpu_custom_call.1} parent=11 // pred_check_branch
          %273 = sbr.rel (%p271) target = $region40
        $region39: #{tpu_custom_call.1} parent=11 // pred_region
          _
        $region40: #{tpu_custom_call.1} parent=11 // pred_fallthru
          _
        // Predicated region
        $region41: #{tpu_custom_call.1} parent=11 // pred_check
          %p274 = pneg %p212
        $region42: #{tpu_custom_call.1} parent=11 // pred_check_branch
          %276 = sbr.rel (%p274) target = $region44
        $region43: #{tpu_custom_call.1} parent=11 // pred_region
          _
        $region44: #{tpu_custom_call.1} parent=11 // pred_fallthru
          _
      $region12: #{tpu_custom_call.1} parent=5 // pred_fallthru
        _
      %p277 = scmp.lt.s32.totalorder %s18, 2
      // Predicated region
      $region45: #{tpu_custom_call.1} parent=5 // pred_check
        %p278 = pneg %p277
      $region46: #{tpu_custom_call.1} parent=5 // pred_check_branch
        %280 = sbr.rel (%p278) target = $region48
      $region47: #{tpu_custom_call.1} parent=5 // pred_region
        // Predicated region
        $region49: #{tpu_custom_call.1} parent=47 // pred_check
          %p281 = pneg %p38
        $region50: #{tpu_custom_call.1} parent=47 // pred_check_branch
          %283 = sbr.rel (%p281) target = $region52
        $region51: #{tpu_custom_call.1} parent=47 // pred_region
          %s284 = smul.u32 2, %s18
          %p285 = scmp.lt.s32.totalorder %s284, 3
          %s286 = scalar_select %p285, %s284, 3
          %s287 = smul.addr %s286, 4
          %s288 = scalar_lea.vmem %s0, %s287
          %s289 = smul.u32 2, %s18
        $region52: #{tpu_custom_call.1} parent=47 // pred_fallthru
          _
      $region48: #{tpu_custom_call.1} parent=5 // pred_fallthru
        _
      %p290 = scmp.le.s32.totalorder 1, %s18
      %p291 = scmp.lt.s32.totalorder %s18, 3
      %p292 = pnand %p290, %p291
      %p293 = pneg %p292
      // Predicated region
      $region53: #{tpu_custom_call.1} parent=5 // pred_check
        _
      $region54: #{tpu_custom_call.1} parent=5 // pred_check_branch
        %295 = sbr.rel (%p292) target = $region56
      $region55: #{tpu_custom_call.1} parent=5 // pred_region
        %s296 = ssub.s32 %s18, 1
        %s297 = smul.u32 2, %s23
        %p298 = scmp.lt.s32.totalorder %s297, 3
        %s299 = scalar_select %p298, %s297, 3
        %s300 = smul.addr %s299, 4
        %s301 = scalar_lea.vmem %s0, %s300
        %p302 = pneg %p44
        %p303 = pneg %p41
        %p304 = pneg %p65
        %p305 = pneg %p62
        %p306 = pneg %p86
        %p307 = pneg %p83
        %p308 = pneg %p107
        %p309 = pneg %p104
        %p310 = pneg %p128
        %p311 = pneg %p125
        %p312 = pneg %p149
        %p313 = pneg %p146
        %p314 = pneg %p170
        %p315 = pneg %p167
        %p316 = pneg %p191
        %p317 = pneg %p188
        %p318 = pneg %p212
        %p319 = pneg %p209
        %p320 = pneg %p238
        %p321 = pneg %p235
        %s322 = sand.u32 %s225, 1
        %s323 = scalar_lea.sflag [#allocation3], %s322
        %s324 = sand.u32 %s225, 1
        %s325 = smul.addr %s324, 4
        %s326 = scalar_lea.vmem [#allocation2], %s325
        %s327 = smul.u32 2, %s23
        %p328 = scmp.lt.s32.totalorder %s327, 3
        %s329 = scalar_select %p328, %s327, 3
        %s330 = smul.addr %s329, 4
        %s331 = scalar_lea.vmem %s0, %s330
        %s332 = smul.u32 2, %s23
        %s333 = smul.u32 2, %s23
        %v334 = vld [vmem:[%s331] sm:$0x77]
        %v335 = vld [vmem:[%s3] sm:$0xff]
        %v336 = vld [vmem:[%s3 + $0x8] sm:$0xff]
        %v337 = vld [vmem:[%s3 + $0x10] sm:$0xff]
        %v338 = vld [vmem:[%s3 + $0x18] sm:$0xff]
        %v339 = vld [vmem:[%s1] sm:$0xff]
        %v340 = vld [vmem:[%s1 + $0x8] sm:$0xff]
        %v341 = vld [vmem:[%s1 + $0x10] sm:$0xff]
        %v342 = vld [vmem:[%s1 + $0x18] sm:$0xff]
        %v343 = vand.u32 2147483647, %v334
        %vm344 = vcmp.le.f32.partialorder %v343, 0.7853982
        %vm345 = vcmp.lt.s32.totalorder %v334, 0
        %v346 = vand.u32 %v334, 2139095040
        %v347 = vshrl.u32 %v346, 23
        %v348 = vsub.s32 %v347, 127
        %v349 = vand.u32 2147483647, %v334
        %v350 = vand.u32 %v349, 8388607
        %v351 = vor.u32 %v350, 8388608
        %v352 = vsub.s32 0, %v351
        %v353 = vadd.s32 %v348, 1
        %vm354 = vcmp.gt.s32.totalorder %v353, 0
        %v355 = vsel %vm354, %v353, 0
        %v356 = vshrl.u32 %v355, 5
        %v357 = vand.u32 %v355, 31
        %v358 = vsub.s32 32, %v357
        %v359 = vshrl.u32 683565275, %v358
        %v360 = vshll.u32 683565275, %v357
        %v361 = vshrl.u32 2475754826, %v358
        %v362 = vor.u32 %v360, %v361
        %v363 = vshll.u32 2475754826, %v357
        %v364 = vshrl.u32 2131351028, %v358
        %v365 = vor.u32 %v363, %v364
        %v366 = vshll.u32 2131351028, %v357
        %v367 = vshrl.u32 2102212464, %v358
        %v368 = vor.u32 %v366, %v367
        %v369 = vshll.u32 2102212464, %v357
        %v370 = vshrl.u32 920167782, %v358
        %v371 = vor.u32 %v369, %v370
        %v372 = vshll.u32 920167782, %v357
        %v373 = vshrl.u32 1326507024, %v358
        %v374 = vor.u32 %v372, %v373
        %vm375 = vcmp.lt.s32.totalorder %v356, 1
        %vm376 = vcmp.lt.s32.totalorder %v356, 2
        %vm377 = vcmp.lt.s32.totalorder %v356, 3
        %vm378 = vcmp.lt.s32.totalorder %v356, 4
        %v379 = vsel %vm375, %v359, %v362
        %v380 = vsel %vm378, %v368, 2102212464
        %v381 = vsel %vm377, %v365, %v380
        %v382 = vsel %vm376, %v379, %v381
        %v383 = vsel %vm375, %v362, %v365
        %v384 = vsel %vm378, %v371, 920167782
        %v385 = vsel %vm377, %v368, %v384
        %v386 = vsel %vm376, %v383, %v385
        %v387 = vsel %vm375, %v365, %v368
        %v388 = vsel %vm378, %v374, 1326507024
        %v389 = vsel %vm377, %v371, %v388
        %v390 = vsel %vm376, %v387, %v389
        %v391 = vshll.u32 %v351, 8
        %v392 = vmul.u32.u64.compose %v391, %v390
        %v393 = vextract.low.u32 %v392
        %v394 = vextract.high.u32 %v392
        %v395 = vmul.u32.u64.compose %v391, %v386
        %v396 = vextract.low.u32 %v395
        %v397 = vextract.high.u32 %v395
        %v398 = vmul.u32 %v391, %v382
        %v399 = vadd.s32 %v394, %v396
        %vm400 = vc.u32 %v394, %v396
        %v401 = vadd.s32 %v397, 1
        %v402 = vsel %vm400, %v401, %v397
        %v403 = vadd.s32 %v398, %v402
        %v404 = vadd.s32 %v403, 536870912
        %v405 = vshrl.u32 %v404, 30
        %v406 = vshll.u32 %v405, 30
        %v407 = vsub.s32 %v403, %v406
        %vm408 = vcmp.lt.s32.totalorder %v407, 0
        %v409 = vsub.s32 0, %v407
        %v410 = vsel %vm408, %v409, %v407
        %v411 = vclz %v410
        %v412 = vsub.s32 %v411, 2
        %vm413 = vcmp.gt.s32.totalorder 0, %v412
        %v414 = vsel %vm413, 0, %v412
        %v415 = vsub.s32 32, %v414
        %v416 = vshll.u32 %v407, %v414
        %v417 = vshrl.u32 %v399, %v415
        %v418 = vor.u32 %v416, %v417
        %v419 = vsub.s32 4294967266, %v414
        %v420 = vadd.s32 %v419, 127
        %v421 = vshll.u32 %v420, 23
        %v422 = vor.u32 4788187, %v421
        %v423 = vand.u32 2147483647, %v422
        %v425 = vcvt.s32.f32 %v418
        %v426 = vmul.f32 %v425, %v423
        %v427 = vxor.u32 %v426, 2147483648
        %v428 = vsel %vm345, %v427, %v426
        %v429 = vsub.s32 4, %v405
        %v430 = vsel %vm345, %v429, %v405
        %v431 = vsel %vm344, %v334, %v428
        %v432 = vsel %vm344, 0, %v430
        %v433 = vcosq.f32.pop %v431
        %v434 = vsinq.f32.pop %v431
        %vm435 = vweird.f32 %v334
        %v436 = vand.u32 %v432, 3
        %vm437 = vcmp.lt.s32.totalorder %v436, 2
        %vm438 = vcmp.eq.s32.totalorder %v436, 0
        %v439 = vxor.u32 %v434, 2147483648
        %v440 = vsel %vm438, %v433, %v439
        %vm441 = vcmp.eq.s32.totalorder %v436, 2
        %v442 = vxor.u32 %v433, 2147483648
        %v443 = vsel %vm441, %v442, %v434
        %v444 = vsel %vm437, %v440, %v443
        %v445 = vsel %vm435, nan, %v444
        %v447 = vcombine.high %v445, %v445
        %vm448 = vcmask 15360
        %v450 = vsel %vm448, %v339, 0
        %v453 = vsel %vm448, %v340, 0
        %v456 = vsel %vm448, %v341, 0
        %v459 = vsel %vm448, %v342, 0
        %vm461 = vcmask 1041408
        %v462 = vsel %vm461, %v445, 0
        %v464 = vsel %vm461, %v447, 0
        %466 = vmatprep.subr.mxu0 %v464
        %467 = vmatpush1.msra.mxu0 %v462
        %468 = vmatprep.subr.mxu0 0.0
        %469 = vmatpush1.msra.mxu0 0.0
        %470 = vmatprep.subr.mxu0 0.0
        %471 = vmatpush1.msra.mxu0 0.0
        %472 = vmatprep.subr.mxu0 0.0
        %473 = vmatpush1.msra.mxu0 0.0
        %474 = vmatprep.subr.mxu0 0.0
        %475 = vmatpush1.msra.mxu0 0.0
        %476 = vmatprep.subr.mxu0 0.0
        %477 = vmatpush1.msra.mxu0 0.0
        %478 = vmatprep.subr.mxu0 0.0
        %479 = vmatpush1.msra.mxu0 0.0
        %480 = vmatprep.subr.mxu0 0.0
        %481 = vmatpush1.msra.mxu0 0.0
        %482 = vmatprep.subr.mxu0 0.0
        %483 = vmatpush1.msra.mxu0 0.0
        %484 = vmatprep.subr.mxu0 0.0
        %485 = vmatpush1.msra.mxu0 0.0
        %486 = vmatprep.subr.mxu0 0.0
        %487 = vmatpush1.msra.mxu0 0.0
        %488 = vmatprep.subr.mxu0 0.0
        %489 = vmatpush1.msra.mxu0 0.0
        %490 = vmatprep.subr.mxu0 0.0
        %491 = vmatpush1.msra.mxu0 0.0
        %492 = vmatprep.subr.mxu0 0.0
        %493 = vmatpush1.msra.mxu0 0.0
        %494 = vmatprep.subr.mxu0 0.0
        %495 = vmatpush1.msra.mxu0 0.0
        %496 = vmatprep.subr.mxu0 0.0
        %497 = vmatpush1.msra.mxu0 0.0
        %498 = vmatprep.subr.mxu0 0.0
        %499 = vmatpush1.msra.mxu0 0.0
        %500 = vmatprep.subr.mxu0 0.0
        %501 = vmatpush1.msra.mxu0 0.0
        %502 = vmatprep.subr.mxu0 0.0
        %503 = vmatpush1.msra.mxu0 0.0
        %504 = vmatprep.subr.mxu0 0.0
        %505 = vmatpush1.msra.mxu0 0.0
        %506 = vmatprep.subr.mxu0 0.0
        %507 = vmatpush1.msra.mxu0 0.0
        %508 = vmatprep.subr.mxu0 0.0
        %509 = vmatpush1.msra.mxu0 0.0
        %510 = vmatprep.subr.mxu0 0.0
        %511 = vmatpush1.msra.mxu0 0.0
        %512 = vmatprep.subr.mxu0 0.0
        %513 = vmatpush1.msra.mxu0 0.0
        %514 = vmatprep.subr.mxu0 0.0
        %515 = vmatpush1.msra.mxu0 0.0
        %516 = vmatprep.subr.mxu0 0.0
        %517 = vmatpush1.msra.mxu0 0.0
        %518 = vmatprep.subr.mxu0 0.0
        %519 = vmatpush1.msra.mxu0 0.0
        %520 = vmatprep.subr.mxu0 0.0
        %521 = vmatpush1.msra.mxu0 0.0
        %522 = vmatprep.subr.mxu0 0.0
        %523 = vmatpush1.msra.mxu0 0.0
        %524 = vmatprep.subr.mxu0 0.0
        %525 = vmatpush1.msra.mxu0 0.0
        %526 = vmatprep.subr.mxu0 0.0
        %527 = vmatpush1.msra.mxu0 0.0
        %528 = vmatprep.subr.mxu0 0.0
        %529 = vmatpush1.msra.mxu0 0.0
        %530 = vmatprep.mubr.f32.mxu0 0.0
        %531 = vmatmul.mubr.f32.gmra.mrb[0].mxu0 %v450
        %v532 = vpop.f32.mrb[0].mxu0
        %v533 = vadd.f32 0.0, %v532
        %v534 = vpop.f32.mrb[0].mxu0
        %v535 = vadd.f32 0.0, %v534
        %536 = vmatprep.mubr.f32.mxu0 0.0
        %537 = vmatmul.mubr.f32.gmra.mrb[0].mxu0 %v453
        %v538 = vpop.f32.mrb[0].mxu0
        %v539 = vadd.f32 0.0, %v538
        %v540 = vpop.f32.mrb[0].mxu0
        %v541 = vadd.f32 0.0, %v540
        %542 = vmatprep.mubr.f32.mxu0 0.0
        %543 = vmatmul.mubr.f32.gmra.mrb[0].mxu0 %v456
        %v544 = vpop.f32.mrb[0].mxu0
        %v545 = vadd.f32 0.0, %v544
        %v546 = vpop.f32.mrb[0].mxu0
        %v547 = vadd.f32 0.0, %v546
        %548 = vmatprep.mubr.f32.mxu0 0.0
        %549 = vmatmul.mubr.f32.gmra.mrb[0].mxu0 %v459
        %v550 = vpop.f32.mrb[0].mxu0
        %v551 = vadd.f32 0.0, %v550
        %v552 = vpop.f32.mrb[0].mxu0
        %v553 = vadd.f32 0.0, %v552
        %554 = vdwg.mxu0
        %v556 = vcombine.high %v334, %v334
        %vm557 = vcmask 23552
        %v559 = vsel %vm557, %v335, 0
        %v562 = vsel %vm557, %v336, 0
        %v565 = vsel %vm557, %v337, 0
        %v568 = vsel %vm557, %v338, 0
        %vm570 = vcmask 1042432
        %v571 = vsel %vm570, %v334, 0
        %v573 = vsel %vm570, %v556, 0
        %575 = vmatprep.subr.mxu0 %v573
        %576 = vmatpush1.msra.mxu0 %v571
        %577 = vmatprep.subr.mxu0 0.0
        %578 = vmatpush1.msra.mxu0 0.0
        %579 = vmatprep.subr.mxu0 0.0
        %580 = vmatpush1.msra.mxu0 0.0
        %581 = vmatprep.subr.mxu0 0.0
        %582 = vmatpush1.msra.mxu0 0.0
        %583 = vmatprep.subr.mxu0 0.0
        %584 = vmatpush1.msra.mxu0 0.0
        %585 = vmatprep.subr.mxu0 0.0
        %586 = vmatpush1.msra.mxu0 0.0
        %587 = vmatprep.subr.mxu0 0.0
        %588 = vmatpush1.msra.mxu0 0.0
        %589 = vmatprep.subr.mxu0 0.0
        %590 = vmatpush1.msra.mxu0 0.0
        %591 = vmatprep.subr.mxu0 0.0
        %592 = vmatpush1.msra.mxu0 0.0
        %593 = vmatprep.subr.mxu0 0.0
        %594 = vmatpush1.msra.mxu0 0.0
        %595 = vmatprep.subr.mxu0 0.0
        %596 = vmatpush1.msra.mxu0 0.0
        %597 = vmatprep.subr.mxu0 0.0
        %598 = vmatpush1.msra.mxu0 0.0
        %599 = vmatprep.subr.mxu0 0.0
        %600 = vmatpush1.msra.mxu0 0.0
        %601 = vmatprep.subr.mxu0 0.0
        %602 = vmatpush1.msra.mxu0 0.0
        %603 = vmatprep.subr.mxu0 0.0
        %604 = vmatpush1.msra.mxu0 0.0
        %605 = vmatprep.subr.mxu0 0.0
        %606 = vmatpush1.msra.mxu0 0.0
        %607 = vmatprep.subr.mxu0 0.0
        %608 = vmatpush1.msra.mxu0 0.0
        %609 = vmatprep.subr.mxu0 0.0
        %610 = vmatpush1.msra.mxu0 0.0
        %611 = vmatprep.subr.mxu0 0.0
        %612 = vmatpush1.msra.mxu0 0.0
        %613 = vmatprep.subr.mxu0 0.0
        %614 = vmatpush1.msra.mxu0 0.0
        %615 = vmatprep.subr.mxu0 0.0
        %616 = vmatpush1.msra.mxu0 0.0
        %617 = vmatprep.subr.mxu0 0.0
        %618 = vmatpush1.msra.mxu0 0.0
        %619 = vmatprep.subr.mxu0 0.0
        %620 = vmatpush1.msra.mxu0 0.0
        %621 = vmatprep.subr.mxu0 0.0
        %622 = vmatpush1.msra.mxu0 0.0
        %623 = vmatprep.subr.mxu0 0.0
        %624 = vmatpush1.msra.mxu0 0.0
        %625 = vmatprep.subr.mxu0 0.0
        %626 = vmatpush1.msra.mxu0 0.0
        %627 = vmatprep.subr.mxu0 0.0
        %628 = vmatpush1.msra.mxu0 0.0
        %629 = vmatprep.subr.mxu0 0.0
        %630 = vmatpush1.msra.mxu0 0.0
        %631 = vmatprep.subr.mxu0 0.0
        %632 = vmatpush1.msra.mxu0 0.0
        %633 = vmatprep.subr.mxu0 0.0
        %634 = vmatpush1.msra.mxu0 0.0
        %635 = vmatprep.subr.mxu0 0.0
        %636 = vmatpush1.msra.mxu0 0.0
        %637 = vmatprep.subr.mxu0 0.0
        %638 = vmatpush1.msra.mxu0 0.0
        %639 = vmatprep.mubr.f32.mxu0 0.0
        %640 = vmatmul.mubr.f32.gmra.mrb[0].mxu0 %v559
        %v641 = vpop.f32.mrb[0].mxu0
        %v642 = vadd.f32 %v533, %v641
        %v643 = vpop.f32.mrb[0].mxu0
        %v644 = vadd.f32 %v535, %v643
        %645 = vmatprep.mubr.f32.mxu0 0.0
        %646 = vmatmul.mubr.f32.gmra.mrb[0].mxu0 %v562
        %v647 = vpop.f32.mrb[0].mxu0
        %v648 = vadd.f32 %v539, %v647
        %v649 = vpop.f32.mrb[0].mxu0
        %v650 = vadd.f32 %v541, %v649
        %651 = vmatprep.mubr.f32.mxu0 0.0
        %652 = vmatmul.mubr.f32.gmra.mrb[0].mxu0 %v565
        %v653 = vpop.f32.mrb[0].mxu0
        %v654 = vadd.f32 %v545, %v653
        %v655 = vpop.f32.mrb[0].mxu0
        %v656 = vadd.f32 %v547, %v655
        %657 = vmatprep.mubr.f32.mxu0 0.0
        %658 = vmatmul.mubr.f32.gmra.mrb[0].mxu0 %v568
        %v659 = vpop.f32.mrb[0].mxu0
        %v660 = vadd.f32 %v551, %v659
        %v661 = vpop.f32.mrb[0].mxu0
        %v662 = vadd.f32 %v553, %v661
        %663 = vdwg.mxu0
        %v664 = vld [vmem:[%s2] sm:$0xff]
        %v665 = vld [vmem:[%s2 + $0x8] sm:$0xff]
        %v666 = vld [vmem:[%s2 + $0x10] sm:$0xff]
        %v667 = vld [vmem:[%s2 + $0x18] sm:$0xff]
        %v668 = vand.u32 2147483647, %v334
        %vm669 = vcmp.le.f32.partialorder %v668, 0.7853982
        %vm670 = vcmp.lt.s32.totalorder %v334, 0
        %v671 = vand.u32 %v334, 2139095040
        %v672 = vshrl.u32 %v671, 23
        %v673 = vsub.s32 %v672, 127
        %v674 = vand.u32 2147483647, %v334
        %v675 = vand.u32 %v674, 8388607
        %v676 = vor.u32 %v675, 8388608
        %v677 = vsub.s32 0, %v676
        %v678 = vadd.s32 %v673, 1
        %vm679 = vcmp.gt.s32.totalorder %v678, 0
        %v680 = vsel %vm679, %v678, 0
        %v681 = vshrl.u32 %v680, 5
        %v682 = vand.u32 %v680, 31
        %v683 = vsub.s32 32, %v682
        %v684 = vshrl.u32 683565275, %v683
        %v685 = vshll.u32 683565275, %v682
        %v686 = vshrl.u32 2475754826, %v683
        %v687 = vor.u32 %v685, %v686
        %v688 = vshll.u32 2475754826, %v682
        %v689 = vshrl.u32 2131351028, %v683
        %v690 = vor.u32 %v688, %v689
        %v691 = vshll.u32 2131351028, %v682
        %v692 = vshrl.u32 2102212464, %v683
        %v693 = vor.u32 %v691, %v692
        %v694 = vshll.u32 2102212464, %v682
        %v695 = vshrl.u32 920167782, %v683
        %v696 = vor.u32 %v694, %v695
        %v697 = vshll.u32 920167782, %v682
        %v698 = vshrl.u32 1326507024, %v683
        %v699 = vor.u32 %v697, %v698
        %vm700 = vcmp.lt.s32.totalorder %v681, 1
        %vm701 = vcmp.lt.s32.totalorder %v681, 2
        %vm702 = vcmp.lt.s32.totalorder %v681, 3
        %vm703 = vcmp.lt.s32.totalorder %v681, 4
        %v704 = vsel %vm700, %v684, %v687
        %v705 = vsel %vm703, %v693, 2102212464
        %v706 = vsel %vm702, %v690, %v705
        %v707 = vsel %vm701, %v704, %v706
        %v708 = vsel %vm700, %v687, %v690
        %v709 = vsel %vm703, %v696, 920167782
        %v710 = vsel %vm702, %v693, %v709
        %v711 = vsel %vm701, %v708, %v710
        %v712 = vsel %vm700, %v690, %v693
        %v713 = vsel %vm703, %v699, 1326507024
        %v714 = vsel %vm702, %v696, %v713
        %v715 = vsel %vm701, %v712, %v714
        %v716 = vshll.u32 %v676, 8
        %v717 = vmul.u32.u64.compose %v716, %v715
        %v718 = vextract.low.u32 %v717
        %v719 = vextract.high.u32 %v717
        %v720 = vmul.u32.u64.compose %v716, %v711
        %v721 = vextract.low.u32 %v720
        %v722 = vextract.high.u32 %v720
        %v723 = vmul.u32 %v716, %v707
        %v724 = vadd.s32 %v719, %v721
        %vm725 = vc.u32 %v719, %v721
        %v726 = vadd.s32 %v722, 1
        %v727 = vsel %vm725, %v726, %v722
        %v728 = vadd.s32 %v723, %v727
        %v729 = vadd.s32 %v728, 536870912
        %v730 = vshrl.u32 %v729, 30
        %v731 = vshll.u32 %v730, 30
        %v732 = vsub.s32 %v728, %v731
        %vm733 = vcmp.lt.s32.totalorder %v732, 0
        %v734 = vsub.s32 0, %v732
        %v735 = vsel %vm733, %v734, %v732
        %v736 = vclz %v735
        %v737 = vsub.s32 %v736, 2
        %vm738 = vcmp.gt.s32.totalorder 0, %v737
        %v739 = vsel %vm738, 0, %v737
        %v740 = vsub.s32 32, %v739
        %v741 = vshll.u32 %v732, %v739
        %v742 = vshrl.u32 %v724, %v740
        %v743 = vor.u32 %v741, %v742
        %v744 = vsub.s32 4294967266, %v739
        %v745 = vadd.s32 %v744, 127
        %v746 = vshll.u32 %v745, 23
        %v747 = vor.u32 4788187, %v746
        %v748 = vand.u32 2147483647, %v747
        %v750 = vcvt.s32.f32 %v743
        %v751 = vmul.f32 %v750, %v748
        %v752 = vxor.u32 %v751, 2147483648
        %v753 = vsel %vm670, %v752, %v751
        %v754 = vsub.s32 4, %v730
        %v755 = vsel %vm670, %v754, %v730
        %v756 = vsel %vm669, %v334, %v753
        %v757 = vsel %vm669, 0, %v755
        %v758 = vcosq.f32.pop %v756
        %v759 = vsinq.f32.pop %v756
        %vm760 = vweird.f32 %v334
        %v761 = vadd.s32 %v757, 3
        %v762 = vand.u32 %v761, 3
        %vm763 = vcmp.lt.s32.totalorder %v762, 2
        %vm764 = vcmp.eq.s32.totalorder %v762, 0
        %v765 = vxor.u32 %v759, 2147483648
        %v766 = vsel %vm764, %v758, %v765
        %vm767 = vcmp.eq.s32.totalorder %v762, 2
        %v768 = vxor.u32 %v758, 2147483648
        %v769 = vsel %vm767, %v768, %v759
        %v770 = vsel %vm763, %v766, %v769
        %v771 = vsel %vm760, nan, %v770
        %v773 = vcombine.high %v771, %v771
        %v775 = vsel %vm448, %v664, 0
        %v778 = vsel %vm448, %v665, 0
        %v781 = vsel %vm448, %v666, 0
        %v784 = vsel %vm448, %v667, 0
        %v786 = vsel %vm461, %v771, 0
        %v788 = vsel %vm461, %v773, 0
        %790 = vmatprep.subr.mxu0 %v788
        %791 = vmatpush1.msra.mxu0 %v786
        %792 = vmatprep.subr.mxu0 0.0
        %793 = vmatpush1.msra.mxu0 0.0
        %794 = vmatprep.subr.mxu0 0.0
        %795 = vmatpush1.msra.mxu0 0.0
        %796 = vmatprep.subr.mxu0 0.0
        %797 = vmatpush1.msra.mxu0 0.0
        %798 = vmatprep.subr.mxu0 0.0
        %799 = vmatpush1.msra.mxu0 0.0
        %800 = vmatprep.subr.mxu0 0.0
        %801 = vmatpush1.msra.mxu0 0.0
        %802 = vmatprep.subr.mxu0 0.0
        %803 = vmatpush1.msra.mxu0 0.0
        %804 = vmatprep.subr.mxu0 0.0
        %805 = vmatpush1.msra.mxu0 0.0
        %806 = vmatprep.subr.mxu0 0.0
        %807 = vmatpush1.msra.mxu0 0.0
        %808 = vmatprep.subr.mxu0 0.0
        %809 = vmatpush1.msra.mxu0 0.0
        %810 = vmatprep.subr.mxu0 0.0
        %811 = vmatpush1.msra.mxu0 0.0
        %812 = vmatprep.subr.mxu0 0.0
        %813 = vmatpush1.msra.mxu0 0.0
        %814 = vmatprep.subr.mxu0 0.0
        %815 = vmatpush1.msra.mxu0 0.0
        %816 = vmatprep.subr.mxu0 0.0
        %817 = vmatpush1.msra.mxu0 0.0
        %818 = vmatprep.subr.mxu0 0.0
        %819 = vmatpush1.msra.mxu0 0.0
        %820 = vmatprep.subr.mxu0 0.0
        %821 = vmatpush1.msra.mxu0 0.0
        %822 = vmatprep.subr.mxu0 0.0
        %823 = vmatpush1.msra.mxu0 0.0
        %824 = vmatprep.subr.mxu0 0.0
        %825 = vmatpush1.msra.mxu0 0.0
        %826 = vmatprep.subr.mxu0 0.0
        %827 = vmatpush1.msra.mxu0 0.0
        %828 = vmatprep.subr.mxu0 0.0
        %829 = vmatpush1.msra.mxu0 0.0
        %830 = vmatprep.subr.mxu0 0.0
        %831 = vmatpush1.msra.mxu0 0.0
        %832 = vmatprep.subr.mxu0 0.0
        %833 = vmatpush1.msra.mxu0 0.0
        %834 = vmatprep.subr.mxu0 0.0
        %835 = vmatpush1.msra.mxu0 0.0
        %836 = vmatprep.subr.mxu0 0.0
        %837 = vmatpush1.msra.mxu0 0.0
        %838 = vmatprep.subr.mxu0 0.0
        %839 = vmatpush1.msra.mxu0 0.0
        %840 = vmatprep.subr.mxu0 0.0
        %841 = vmatpush1.msra.mxu0 0.0
        %842 = vmatprep.subr.mxu0 0.0
        %843 = vmatpush1.msra.mxu0 0.0
        %844 = vmatprep.subr.mxu0 0.0
        %845 = vmatpush1.msra.mxu0 0.0
        %846 = vmatprep.subr.mxu0 0.0
        %847 = vmatpush1.msra.mxu0 0.0
        %848 = vmatprep.subr.mxu0 0.0
        %849 = vmatpush1.msra.mxu0 0.0
        %850 = vmatprep.subr.mxu0 0.0
        %851 = vmatpush1.msra.mxu0 0.0
        %852 = vmatprep.subr.mxu0 0.0
        %853 = vmatpush1.msra.mxu0 0.0
        %854 = vmatprep.mubr.f32.mxu0 0.0
        %855 = vmatmul.mubr.f32.gmra.mrb[0].mxu0 %v775
        %v856 = vpop.f32.mrb[0].mxu0
        %v857 = vadd.f32 0.0, %v856
        %v858 = vpop.f32.mrb[0].mxu0
        %v859 = vadd.f32 0.0, %v858
        %860 = vmatprep.mubr.f32.mxu0 0.0
        %861 = vmatmul.mubr.f32.gmra.mrb[0].mxu0 %v778
        %v862 = vpop.f32.mrb[0].mxu0
        %v863 = vadd.f32 0.0, %v862
        %v864 = vpop.f32.mrb[0].mxu0
        %v865 = vadd.f32 0.0, %v864
        %866 = vmatprep.mubr.f32.mxu0 0.0
        %867 = vmatmul.mubr.f32.gmra.mrb[0].mxu0 %v781
        %v868 = vpop.f32.mrb[0].mxu0
        %v869 = vadd.f32 0.0, %v868
        %v870 = vpop.f32.mrb[0].mxu0
        %v871 = vadd.f32 0.0, %v870
        %872 = vmatprep.mubr.f32.mxu0 0.0
        %873 = vmatmul.mubr.f32.gmra.mrb[0].mxu0 %v784
        %v874 = vpop.f32.mrb[0].mxu0
        %v875 = vadd.f32 0.0, %v874
        %v876 = vpop.f32.mrb[0].mxu0
        %v877 = vadd.f32 0.0, %v876
        %878 = vdwg.mxu0
        %v879 = vadd.f32 %v642, %v857
        %v880 = vadd.f32 %v644, %v859
        %v881 = vadd.f32 %v648, %v863
        %v882 = vadd.f32 %v650, %v865
        %v883 = vadd.f32 %v654, %v869
        %v884 = vadd.f32 %v656, %v871
        %v885 = vadd.f32 %v660, %v875
        %v886 = vadd.f32 %v662, %v877
        %v887 = vld [vmem:[%s4] sm:$0xff]
        %v888 = vld [vmem:[%s4 + $0x8] sm:$0xff]
        %v889 = vld [vmem:[%s4 + $0x10] sm:$0xff]
        %v890 = vld [vmem:[%s4 + $0x18] sm:$0xff]
        %892 = vset.pattern.permute.xlu0 0
        %893 = vperm.xlu0 %892, %v887
        %v894 = vpop.permute.xlu0 %893
        %897 = vset.pattern.permute.xlu0 0
        %898 = vperm.xlu0 %897, %v888
        %v899 = vpop.permute.xlu0 %898
        %902 = vset.pattern.permute.xlu0 0
        %903 = vperm.xlu0 %902, %v889
        %v904 = vpop.permute.xlu0 %903
        %907 = vset.pattern.permute.xlu0 0
        %908 = vperm.xlu0 %907, %v890
        %v909 = vpop.permute.xlu0 %908
        %v911 = vadd.f32 %v879, %v894
        %v912 = vadd.f32 %v880, %v894
        %v913 = vadd.f32 %v881, %v899
        %v914 = vadd.f32 %v882, %v899
        %v915 = vadd.f32 %v883, %v904
        %v916 = vadd.f32 %v884, %v904
        %v917 = vadd.f32 %v885, %v909
        %v918 = vadd.f32 %v886, %v909
        %v919 = vtanh.pop %v911
        %v920 = vtanh.pop %v912
        %v921 = vtanh.pop %v913
        %v922 = vtanh.pop %v914
        %v923 = vtanh.pop %v915
        %v924 = vtanh.pop %v916
        %v925 = vtanh.pop %v917
        %v926 = vtanh.pop %v918
        %v927 = vld [vmem:[%s5] sm:$0xff]
        %v928 = vld [vmem:[%s5 + $0x8] sm:$0xff]
        %v929 = vld [vmem:[%s5 + $0x10] sm:$0xff]
        %v930 = vld [vmem:[%s5 + $0x18] sm:$0xff]
        %v931 = vld [vmem:[%s6] sm:$0xff]
        %v932 = vld [vmem:[%s6 + $0x8] sm:$0xff]
        %v933 = vld [vmem:[%s6 + $0x10] sm:$0xff]
        %v934 = vld [vmem:[%s6 + $0x18] sm:$0xff]
        %936 = vset.pattern.permute.xlu0 0
        %937 = vperm.xlu0 %936, %v931
        %v938 = vpop.permute.xlu0 %937
        %941 = vset.pattern.permute.xlu0 0
        %942 = vperm.xlu0 %941, %v932
        %v943 = vpop.permute.xlu0 %942
        %946 = vset.pattern.permute.xlu0 0
        %947 = vperm.xlu0 %946, %v933
        %v948 = vpop.permute.xlu0 %947
        %951 = vset.pattern.permute.xlu0 0
        %952 = vperm.xlu0 %951, %v934
        %v953 = vpop.permute.xlu0 %952
        %vm955 = vcmask 261120
        %v957 = vsel %vm955, %v927, 0
        %v960 = vsel %vm955, %v928, 0
        %v963 = vsel %vm955, %v929, 0
        %v966 = vsel %vm955, %v930, 0
        %968 = vmatprep.subr.mxu0 %v920
        %969 = vmatpush1.msra.mxu0 %v919
        %970 = vmatprep.subr.mxu0 %v922
        %971 = vmatpush1.msra.mxu0 %v921
        %972 = vmatprep.subr.mxu0 %v924
        %973 = vmatpush1.msra.mxu0 %v923
        %974 = vmatprep.subr.mxu0 %v926
        %975 = vmatpush1.msra.mxu0 %v925
        %976 = vmatprep.subr.mxu0 0.0
        %977 = vmatpush1.msra.mxu0 0.0
        %978 = vmatprep.subr.mxu0 0.0
        %979 = vmatpush1.msra.mxu0 0.0
        %980 = vmatprep.subr.mxu0 0.0
        %981 = vmatpush1.msra.mxu0 0.0
        %982 = vmatprep.subr.mxu0 0.0
        %983 = vmatpush1.msra.mxu0 0.0
        %984 = vmatprep.subr.mxu0 0.0
        %985 = vmatpush1.msra.mxu0 0.0
        %986 = vmatprep.subr.mxu0 0.0
        %987 = vmatpush1.msra.mxu0 0.0
        %988 = vmatprep.subr.mxu0 0.0
        %989 = vmatpush1.msra.mxu0 0.0
        %990 = vmatprep.subr.mxu0 0.0
        %991 = vmatpush1.msra.mxu0 0.0
        %992 = vmatprep.subr.mxu0 0.0
        %993 = vmatpush1.msra.mxu0 0.0
        %994 = vmatprep.subr.mxu0 0.0
        %995 = vmatpush1.msra.mxu0 0.0
        %996 = vmatprep.subr.mxu0 0.0
        %997 = vmatpush1.msra.mxu0 0.0
        %998 = vmatprep.subr.mxu0 0.0
        %999 = vmatpush1.msra.mxu0 0.0
        %1000 = vmatprep.subr.mxu0 0.0
        %1001 = vmatpush1.msra.mxu0 0.0
        %1002 = vmatprep.subr.mxu0 0.0
        %1003 = vmatpush1.msra.mxu0 0.0
        %1004 = vmatprep.subr.mxu0 0.0
        %1005 = vmatpush1.msra.mxu0 0.0
        %1006 = vmatprep.subr.mxu0 0.0
        %1007 = vmatpush1.msra.mxu0 0.0
        %1008 = vmatprep.subr.mxu0 0.0
        %1009 = vmatpush1.msra.mxu0 0.0
        %1010 = vmatprep.subr.mxu0 0.0
        %1011 = vmatpush1.msra.mxu0 0.0
        %1012 = vmatprep.subr.mxu0 0.0
        %1013 = vmatpush1.msra.mxu0 0.0
        %1014 = vmatprep.subr.mxu0 0.0
        %1015 = vmatpush1.msra.mxu0 0.0
        %1016 = vmatprep.subr.mxu0 0.0
        %1017 = vmatpush1.msra.mxu0 0.0
        %1018 = vmatprep.subr.mxu0 0.0
        %1019 = vmatpush1.msra.mxu0 0.0
        %1020 = vmatprep.subr.mxu0 0.0
        %1021 = vmatpush1.msra.mxu0 0.0
        %1022 = vmatprep.subr.mxu0 0.0
        %1023 = vmatpush1.msra.mxu0 0.0
        %1024 = vmatprep.subr.mxu0 0.0
        %1025 = vmatpush1.msra.mxu0 0.0
        %1026 = vmatprep.subr.mxu0 0.0
        %1027 = vmatpush1.msra.mxu0 0.0
        %1028 = vmatprep.subr.mxu0 0.0
        %1029 = vmatpush1.msra.mxu0 0.0
        %1030 = vmatprep.subr.mxu0 0.0
        %1031 = vmatpush1.msra.mxu0 0.0
        %1032 = vmatprep.mubr.f32.mxu0 0.0
        %1033 = vmatmul.mubr.f32.gmra.mrb[0].mxu0 %v957
        %v1034 = vpop.f32.mrb[0].mxu0
        %v1035 = vadd.f32 %v938, %v1034
        %v1036 = vpop.f32.mrb[0].mxu0
        %v1037 = vadd.f32 %v938, %v1036
        %1038 = vmatprep.mubr.f32.mxu0 0.0
        %1039 = vmatmul.mubr.f32.gmra.mrb[0].mxu0 %v960
        %v1040 = vpop.f32.mrb[0].mxu0
        %v1041 = vadd.f32 %v943, %v1040
        %v1042 = vpop.f32.mrb[0].mxu0
        %v1043 = vadd.f32 %v943, %v1042
        %1044 = vmatprep.mubr.f32.mxu0 0.0
        %1045 = vmatmul.mubr.f32.gmra.mrb[0].mxu0 %v963
        %v1046 = vpop.f32.mrb[0].mxu0
        %v1047 = vadd.f32 %v948, %v1046
        %v1048 = vpop.f32.mrb[0].mxu0
        %v1049 = vadd.f32 %v948, %v1048
        %1050 = vmatprep.mubr.f32.mxu0 0.0
        %1051 = vmatmul.mubr.f32.gmra.mrb[0].mxu0 %v966
        %v1052 = vpop.f32.mrb[0].mxu0
        %v1053 = vadd.f32 %v953, %v1052
        %v1054 = vpop.f32.mrb[0].mxu0
        %v1055 = vadd.f32 %v953, %v1054
        %1056 = vdwg.mxu0
        %v1057 = vtanh.pop %v1035
        %v1058 = vtanh.pop %v1037
        %v1059 = vtanh.pop %v1041
        %v1060 = vtanh.pop %v1043
        %v1061 = vtanh.pop %v1047
        %v1062 = vtanh.pop %v1049
        %v1063 = vtanh.pop %v1053
        %v1064 = vtanh.pop %v1055
        %v1065 = vld [vmem:[%s7] sm:$0x3]
        %v1066 = vld [vmem:[%s8] sm:$0x3]
        %1068 = vset.pattern.permute.xlu0 0
        %1069 = vperm.xlu0 %1068, %v1066
        %v1070 = vpop.permute.xlu0 %1069
        %v1073 = vsel %vm955, %v1065, 0
        %1075 = vmatprep.subr.mxu0 %v1058
        %1076 = vmatpush1.msra.mxu0 %v1057
        %1077 = vmatprep.subr.mxu0 %v1060
        %1078 = vmatpush1.msra.mxu0 %v1059
        %1079 = vmatprep.subr.mxu0 %v1062
        %1080 = vmatpush1.msra.mxu0 %v1061
        %1081 = vmatprep.subr.mxu0 %v1064
        %1082 = vmatpush1.msra.mxu0 %v1063
        %1083 = vmatprep.subr.mxu0 0.0
        %1084 = vmatpush1.msra.mxu0 0.0
        %1085 = vmatprep.subr.mxu0 0.0
        %1086 = vmatpush1.msra.mxu0 0.0
        %1087 = vmatprep.subr.mxu0 0.0
        %1088 = vmatpush1.msra.mxu0 0.0
        %1089 = vmatprep.subr.mxu0 0.0
        %1090 = vmatpush1.msra.mxu0 0.0
        %1091 = vmatprep.subr.mxu0 0.0
        %1092 = vmatpush1.msra.mxu0 0.0
        %1093 = vmatprep.subr.mxu0 0.0
        %1094 = vmatpush1.msra.mxu0 0.0
        %1095 = vmatprep.subr.mxu0 0.0
        %1096 = vmatpush1.msra.mxu0 0.0
        %1097 = vmatprep.subr.mxu0 0.0
        %1098 = vmatpush1.msra.mxu0 0.0
        %1099 = vmatprep.subr.mxu0 0.0
        %1100 = vmatpush1.msra.mxu0 0.0
        %1101 = vmatprep.subr.mxu0 0.0
        %1102 = vmatpush1.msra.mxu0 0.0
        %1103 = vmatprep.subr.mxu0 0.0
        %1104 = vmatpush1.msra.mxu0 0.0
        %1105 = vmatprep.subr.mxu0 0.0
        %1106 = vmatpush1.msra.mxu0 0.0
        %1107 = vmatprep.subr.mxu0 0.0
        %1108 = vmatpush1.msra.mxu0 0.0
        %1109 = vmatprep.subr.mxu0 0.0
        %1110 = vmatpush1.msra.mxu0 0.0
        %1111 = vmatprep.subr.mxu0 0.0
        %1112 = vmatpush1.msra.mxu0 0.0
        %1113 = vmatprep.subr.mxu0 0.0
        %1114 = vmatpush1.msra.mxu0 0.0
        %1115 = vmatprep.subr.mxu0 0.0
        %1116 = vmatpush1.msra.mxu0 0.0
        %1117 = vmatprep.subr.mxu0 0.0
        %1118 = vmatpush1.msra.mxu0 0.0
        %1119 = vmatprep.subr.mxu0 0.0
        %1120 = vmatpush1.msra.mxu0 0.0
        %1121 = vmatprep.subr.mxu0 0.0
        %1122 = vmatpush1.msra.mxu0 0.0
        %1123 = vmatprep.subr.mxu0 0.0
        %1124 = vmatpush1.msra.mxu0 0.0
        %1125 = vmatprep.subr.mxu0 0.0
        %1126 = vmatpush1.msra.mxu0 0.0
        %1127 = vmatprep.subr.mxu0 0.0
        %1128 = vmatpush1.msra.mxu0 0.0
        %1129 = vmatprep.subr.mxu0 0.0
        %1130 = vmatpush1.msra.mxu0 0.0
        %1131 = vmatprep.subr.mxu0 0.0
        %1132 = vmatpush1.msra.mxu0 0.0
        %1133 = vmatprep.subr.mxu0 0.0
        %1134 = vmatpush1.msra.mxu0 0.0
        %1135 = vmatprep.subr.mxu0 0.0
        %1136 = vmatpush1.msra.mxu0 0.0
        %1137 = vmatprep.subr.mxu0 0.0
        %1138 = vmatpush1.msra.mxu0 0.0
        %1139 = vmatprep.mubr.f32.mxu0 0.0
        %1140 = vmatmul.mubr.f32.gmra.mrb[0].mxu0 %v1073
        %v1141 = vpop.f32.mrb[0].mxu0
        %v1142 = vadd.f32 %v1070, %v1141
        %v1143 = vpop.f32.mrb[0].mxu0
        %v1144 = vadd.f32 %v1070, %v1143
        %1145 = vdwg.mxu0
        %v1148 = vcombine.low %v1142, %v1144
        %v1150 = vunpack.c.l.s4 1983009808
        %v1151 = vunpack.c.0.s8 %v1150
        %v1152 = vlaneseq
        %v1153 = vshrl.u32 %v1152, 7
        %v1154 = vsub.s32 %v1151, %v1153
        %v1155 = vrot.slane %v1148, %v1154
        %1157 = vst [vmem:[%s326] sm:$0xf] %v1155
        %s1158 = sand.u32 %s225, 1
        %s1159 = scalar_lea.sflag [#allocation3], %s1158
        %s1160 = sand.u32 %s225, 1
        %s1161 = smul.addr %s1160, 4
        %s1162 = scalar_lea.vmem [#allocation2], %s1161
        // Predicated region
        $region57: #{tpu_custom_call.1} parent=55 // pred_check
          %p1163 = pneg %p235
        $region58: #{tpu_custom_call.1} parent=55 // pred_check_branch
          %1165 = sbr.rel (%p1163) target = $region60
        $region59: #{tpu_custom_call.1} parent=55 // pred_region
          %s1166 = smul.u32 2, %s23
          %s1168 = ssub.s32 64, 64
          %1169 = vsyncadd %s1159, %s1168
          %s1170 = smul.addr %s1166, 32
          %s1171 = scalar_lea.hbm %s9, %s1170
          %s1173 = sshll.u32 %s1162, 4
          %s1174 = int_to_ptr.vmem [resolvable:$true] %s1173
          %1176 = dma.vmem_to_hbm [thread:$0]  %s1174, 64, %s1171, %s1159
        $region60: #{tpu_custom_call.1} parent=55 // pred_fallthru
          _
      $region56: #{tpu_custom_call.1} parent=5 // pred_fallthru
        _
      %p1177 = scmp.le.s32.totalorder 2, %s18
      // Predicated region
      $region61: #{tpu_custom_call.1} parent=5 // pred_check
        %p1178 = pneg %p1177
      $region62: #{tpu_custom_call.1} parent=5 // pred_check_branch
        %1180 = sbr.rel (%p1178) target = $region64
      $region63: #{tpu_custom_call.1} parent=5 // pred_region
        %s1181 = ssub.s32 %s18, 2
        // Predicated region
        $region65: #{tpu_custom_call.1} parent=63 // pred_check
          %p1182 = pneg %p241
        $region66: #{tpu_custom_call.1} parent=63 // pred_check_branch
          %1184 = sbr.rel (%p1182) target = $region68
        $region67: #{tpu_custom_call.1} parent=63 // pred_region
          %s1185 = sand.u32 %s226, 1
          %s1186 = scalar_lea.sflag [#allocation3], %s1185
          %s1187 = sand.u32 %s226, 1
          %s1188 = smul.addr %s1187, 4
          %s1189 = scalar_lea.vmem [#allocation2], %s1188
          %1190 = dma.done %s1186, 64
        $region68: #{tpu_custom_call.1} parent=63 // pred_fallthru
          _
      $region64: #{tpu_custom_call.1} parent=5 // pred_fallthru
        _
    $region6: #{tpu_custom_call.1} parent=1 // loop_footer
      %s22 = sadd.s32 1, %s18
    $region7: #{tpu_custom_call.1} parent=1 // loop_footer_branch
      %17 = sbr.rel target = $region3
    $region8: #{tpu_custom_call.1} parent=1 // loop_exit
      _
    %1191 = vsyncpa [#allocation3], 1
    %s1192 = scalar_lea.sflag [#allocation3], 1
    %1193 = vsyncpa %s1192, 1

</llo_original>
